<compile_context>
chip_gen: v6e
topology: v6e:2x2x1
jax: 0.10.0
libtpu: 0.0.40
codegen_flags: <defaults>
</compile_context>

<pallas_src>
import jax
import jax.numpy as jnp
from jax import lax
from jax.experimental import pallas as pl
from jax.experimental.pallas import tpu as pltpu


def _cutmix_kernel(box_ref, x_ref, prev_ref, o_ref):
    """One grid step over a block of Bt images, layout (Bt, C, H, W).

    box_ref  : SMEM int32[4] = [y1, y2, x1, x2]  (scalar prefetch)
    x_ref    : (Bt, C, H, W) current images
    prev_ref : (1, C, H, W)  batch[(g*Bt - 1) mod B]  (rolled image for row 0)
    o_ref    : (Bt, C, H, W) output images
    """
    bt, _c, h, w = x_ref.shape
    y1, y2, x1, x2 = box_ref[0], box_ref[1], box_ref[2], box_ref[3]

    row = lax.broadcasted_iota(jnp.int32, (1, 1, h, w), 2)
    col = lax.broadcasted_iota(jnp.int32, (1, 1, h, w), 3)
    inside = (row >= y1) & (row < y2) & (col >= x1) & (col < x2)

    # rolled[0] of this block = batch[g*Bt - 1] (previous block's last image,
    # wrapping to batch[B-1] for the first block).
    o_ref[0:1] = jnp.where(inside, prev_ref[...], x_ref[0:1])
    if bt > 1:
        # rolled[i] = batch[i-1] for the rest of the block: served from the
        # block already resident in VMEM (no second HBM read of the batch).
        o_ref[1:bt] = jnp.where(inside, x_ref[0:bt - 1], x_ref[1:bt])


def _pick_block_batch(batch_size, per_image_bytes, budget_bytes):
    """Largest Bt (<= batch_size) whose block stays under ~budget_bytes."""
    return int(min(batch_size, max(1, budget_bytes // max(per_image_bytes, 1))))


def random_cutmix(batch, target, *, num_classes, p=0.5, alpha=1.0, key=None,
                  block_budget_bytes=6 << 20):
    """JAX/Pallas equivalent of RandomCutmix.forward.

    batch:  float (B, C, H, W)
    target: int   (B,)
    returns (mixed_batch (B, C, H, W), mixed_onehot_target (B, num_classes))
    """
    B, C, H, W = batch.shape
    dtype = batch.dtype
    itemsize = jnp.dtype(dtype).itemsize
    t1h = jax.nn.one_hot(target, num_classes, dtype=dtype)

    if key is None:
        key = jax.random.PRNGKey(0)
    k_p, k_lam, k_x, k_y = jax.random.split(key, 4)

    # apply with probability p
    apply_cutmix = jax.random.uniform(k_p) < p
    # lambda ~ Beta(alpha, alpha)  (== Dirichlet([alpha, alpha])[0])
    lam0 = jax.random.beta(k_lam, alpha, alpha)
    r_x = jax.random.randint(k_x, (), 0, W)
    r_y = jax.random.randint(k_y, (), 0, H)
    r = 0.5 * jnp.sqrt(1.0 - lam0)
    r_w_half = jnp.floor(r * W).astype(jnp.int32)   # int() truncation, r >= 0
    r_h_half = jnp.floor(r * H).astype(jnp.int32)
    x1 = jnp.maximum(r_x - r_w_half, 0).astype(jnp.int32)
    y1 = jnp.maximum(r_y - r_h_half, 0).astype(jnp.int32)
    x2 = jnp.minimum(r_x + r_w_half, W).astype(jnp.int32)
    y2 = jnp.minimum(r_y + r_h_half, H).astype(jnp.int32)

    # Branch-free skip: degenerate (empty) box and lambda = 1 when not applied.
    box = jnp.where(apply_cutmix,
                    jnp.stack([y1, y2, x1, x2]).astype(jnp.int32),
                    jnp.zeros((4,), jnp.int32))
    # lambda recomputed from the clipped box, exactly as in the PyTorch ref.
    lam = 1.0 - ((x2 - x1) * (y2 - y1)).astype(jnp.float32) / jnp.float32(W * H)
    lam = jnp.where(apply_cutmix, lam, jnp.float32(1.0))

    per_image_bytes = C * H * W * itemsize
    Bt = _pick_block_batch(B, per_image_bytes, block_budget_bytes)
    grid = (pl.cdiv(B, Bt),)

    block_bytes = Bt * per_image_bytes
    # double-buffered in + out + prev, plus slack for the iota/mask temporaries
    vmem_needed = 4 * block_bytes + 2 * per_image_bytes + (2 << 20)
    vmem_limit = int(min(48 << 20, max(vmem_needed, 16 << 20)))  # v7x-safe cap

    cost = pl.CostEstimate(
        flops=2 * B * C * H * W,
        transcendentals=0,
        bytes_accessed=int((2 * B + pl.cdiv(B, Bt)) * per_image_bytes),
    )

    grid_spec = pltpu.PrefetchScalarGridSpec(
        num_scalar_prefetch=1,
        grid=grid,
        in_specs=[
            # current block of images
            pl.BlockSpec((Bt, C, H, W), lambda g, _box: (g, 0, 0, 0)),
            # rolled image for row 0 of the block: batch[(g*Bt - 1) mod B]
            # (written non-negative so the mod never sees a negative operand).
            pl.BlockSpec((1, C, H, W),
                         lambda g, _box: ((g * Bt + B - 1) % B, 0, 0, 0)),
        ],
        out_specs=pl.BlockSpec((Bt, C, H, W), lambda g, _box: (g, 0, 0, 0)),
    )

    mixed = pl.pallas_call(
        _cutmix_kernel,
        grid_spec=grid_spec,
        out_shape=jax.ShapeDtypeStruct((B, C, H, W), dtype),
        compiler_params=pltpu.CompilerParams(
            dimension_semantics=("parallel",),   # no cross-step carry anymore
            vmem_limit_bytes=vmem_limit,
        ),
        cost_estimate=cost,
    )(box, batch, batch)

    # target = lam * target + (1 - lam) * target_rolled  (tiny lerp -> XLA)
    t_mixed = (t1h * lam + jnp.roll(t1h, 1, axis=0) * (1.0 - lam)).astype(dtype)
    return mixed, t_mixed


def _jax_reference(batch, target, num_classes, p, alpha, key):
    """Plain-JAX reference using the same RNG draws as random_cutmix."""
    B, C, H, W = batch.shape
    k_p, k_lam, k_x, k_y = jax.random.split(key, 4)
    apply_cutmix = jax.random.uniform(k_p) < p
    lam0 = jax.random.beta(k_lam, alpha, alpha)
    r_x = jax.random.randint(k_x, (), 0, W)
    r_y = jax.random.randint(k_y, (), 0, H)
    r = 0.5 * jnp.sqrt(1.0 - lam0)
    r_w_half = jnp.floor(r * W).astype(jnp.int32)
    r_h_half = jnp.floor(r * H).astype(jnp.int32)
    x1 = jnp.maximum(r_x - r_w_half, 0)
    y1 = jnp.maximum(r_y - r_h_half, 0)
    x2 = jnp.minimum(r_x + r_w_half, W)
    y2 = jnp.minimum(r_y + r_h_half, H)
    row = jnp.arange(H)[:, None]
    col = jnp.arange(W)[None, :]
    inside = (row >= y1) & (row < y2) & (col >= x1) & (col < x2)
    inside = jnp.where(apply_cutmix, inside, jnp.zeros_like(inside))
    ref_batch = jnp.where(inside[None, None], jnp.roll(batch, 1, axis=0), batch)
    lam = 1.0 - ((x2 - x1) * (y2 - y1)).astype(jnp.float32) / float(W * H)
    lam = jnp.where(apply_cutmix, lam, jnp.float32(1.0))
    t1h = jax.nn.one_hot(target, num_classes, dtype=batch.dtype)
    ref_target = lam * t1h + (1.0 - lam) * jnp.roll(t1h, 1, axis=0)
    return ref_batch, ref_target.astype(batch.dtype)


if __name__ == "__main__":
    NUM_CLASSES = 10
    key = jax.random.PRNGKey(0)
    k_batch, k_target, k_aug = jax.random.split(key, 3)

    # --- case 1: small batch, applied path (p=1.0 forces apply) -------------
    B, C, H, W = 2, 4, 16, 16
    batch = jax.random.normal(k_batch, (B, C, H, W), dtype=jnp.float32)
    target = jax.random.randint(k_target, (B,), 0, NUM_CLASSES, dtype=jnp.int32)

    mixed_batch, mixed_target = random_cutmix(
        batch, target, num_classes=NUM_CLASSES, p=1.0, alpha=1.0, key=k_aug)
    jax.block_until_ready((mixed_batch, mixed_target))
    assert mixed_batch.shape == (B, C, H, W)
    assert mixed_target.shape == (B, NUM_CLASSES)

    ref_batch, ref_target = _jax_reference(batch, target, NUM_CLASSES, 1.0, 1.0, k_aug)
    assert jnp.allclose(mixed_batch, ref_batch), "image mix mismatch (applied)"
    assert jnp.allclose(mixed_target, ref_target), "target mix mismatch (applied)"

    # --- case 2: skipped path (p=0.0 never applies) --------------------------
    skip_batch, skip_target = random_cutmix(
        batch, target, num_classes=NUM_CLASSES, p=0.0, alpha=1.0, key=k_aug)
    jax.block_until_ready((skip_batch, skip_target))
    t1h = jax.nn.one_hot(target, NUM_CLASSES, dtype=batch.dtype)
    assert jnp.allclose(skip_batch, batch), "skip path should return the batch"
    assert jnp.allclose(skip_target, t1h), "skip path should return one-hot target"

    # --- case 3: odd batch size -> multi-block grid + tail block -------------
    B2 = 5
    batch2 = jax.random.normal(jax.random.fold_in(k_batch, 1),
                               (B2, C, H, W), dtype=jnp.float32)
    target2 = jax.random.randint(jax.random.fold_in(k_target, 1),
                                 (B2,), 0, NUM_CLASSES, dtype=jnp.int32)
    per_img = C * H * W * 4
    mixed_batch2, mixed_target2 = random_cutmix(
        batch2, target2, num_classes=NUM_CLASSES, p=1.0, alpha=1.0, key=k_aug,
        block_budget_bytes=2 * per_img)   # force Bt=2 -> grid=3 with a tail block
    jax.block_until_ready((mixed_batch2, mixed_target2))
    ref_batch2, ref_target2 = _jax_reference(batch2, target2, NUM_CLASSES, 1.0, 1.0, k_aug)
    assert jnp.allclose(mixed_batch2, ref_batch2), "image mix mismatch (odd batch)"
    assert jnp.allclose(mixed_target2, ref_target2), "target mix mismatch (odd batch)"

    print("KERNEL_OK")
</pallas_src>

<mosaic_0001>
module attributes {stable_mosaic.version = 11 : i64} {
  func.func @_cutmix_kernel(%arg0: i32, %arg1: memref<4xi32, #tpu.memory_space<smem>>, %arg2: memref<2x4x16x16xf32, #tpu.memory_space<vmem>>, %arg3: memref<1x4x16x16xf32, #tpu.memory_space<vmem>>, %arg4: memref<2x4x16x16xf32, #tpu.memory_space<vmem>>) attributes {dimension_semantics = [#tpu.dimension_semantics<parallel>], iteration_bounds = array<i64: 1>, scalar_prefetch = 1 : i64, scratch_operands = 0 : i64, tpu.core_type = #tpu.core_type<tc>, window_params = [{transform_indices = @transform_0, window_bounds = array<i64: 2, 4, 16, 16>}, {transform_indices = @transform_1, window_bounds = array<i64: 1, 4, 16, 16>}, {transform_indices = @transform_2, window_bounds = array<i64: 2, 4, 16, 16>}]} {
    %c0 = arith.constant 0 : index
    %0 = memref.load %arg1[%c0] : memref<4xi32, #tpu.memory_space<smem>>
    %c1 = arith.constant 1 : index
    %1 = memref.load %arg1[%c1] : memref<4xi32, #tpu.memory_space<smem>>
    %c2 = arith.constant 2 : index
    %2 = memref.load %arg1[%c2] : memref<4xi32, #tpu.memory_space<smem>>
    %c3 = arith.constant 3 : index
    %3 = memref.load %arg1[%c3] : memref<4xi32, #tpu.memory_space<smem>>
    %4 = tpu.iota {dimensions = array<i32: 2>} : vector<1x1x16x16xi32>
    %5 = tpu.iota {dimensions = array<i32: 3>} : vector<1x1x16x16xi32>
    %6 = vector.broadcast %0 : i32 to vector<1x1x16x16xi32>
    %7 = arith.cmpi sge, %4, %6 : vector<1x1x16x16xi32>
    %8 = vector.broadcast %1 : i32 to vector<1x1x16x16xi32>
    %9 = arith.cmpi slt, %4, %8 : vector<1x1x16x16xi32>
    %10 = arith.andi %7, %9 : vector<1x1x16x16xi1>
    %11 = vector.broadcast %2 : i32 to vector<1x1x16x16xi32>
    %12 = arith.cmpi sge, %5, %11 : vector<1x1x16x16xi32>
    %13 = arith.andi %10, %12 : vector<1x1x16x16xi1>
    %14 = vector.broadcast %3 : i32 to vector<1x1x16x16xi32>
    %15 = arith.cmpi slt, %5, %14 : vector<1x1x16x16xi32>
    %16 = arith.andi %13, %15 : vector<1x1x16x16xi1>
    %c0_0 = arith.constant 0 : index
    %c0_1 = arith.constant 0 : index
    %c0_2 = arith.constant 0 : index
    %c0_3 = arith.constant 0 : index
    %17 = vector.load %arg3[%c0_0, %c0_1, %c0_2, %c0_3] : memref<1x4x16x16xf32, #tpu.memory_space<vmem>>, vector<1x4x16x16xf32>
    %c0_4 = arith.constant 0 : index
    %c0_5 = arith.constant 0 : index
    %c0_6 = arith.constant 0 : index
    %c0_7 = arith.constant 0 : index
    %18 = vector.load %arg2[%c0_4, %c0_5, %c0_6, %c0_7] : memref<2x4x16x16xf32, #tpu.memory_space<vmem>>, vector<1x4x16x16xf32>
    %19 = vector.shape_cast %16 : vector<1x1x16x16xi1> to vector<1x1x16x16xi1>
    %20 = vector.broadcast %19 : vector<1x1x16x16xi1> to vector<1x4x16x16xi1>
    %21 = arith.select %20, %17, %18 : vector<1x4x16x16xi1>, vector<1x4x16x16xf32>
    %c0_8 = arith.constant 0 : index
    %c0_9 = arith.constant 0 : index
    %c0_10 = arith.constant 0 : index
    %c0_11 = arith.constant 0 : index
    %22 = vector.load %arg4[%c0_8, %c0_9, %c0_10, %c0_11] : memref<2x4x16x16xf32, #tpu.memory_space<vmem>>, vector<1x4x16x16xf32>
    tpu.vector_store %arg4[%c0_8, %c0_9, %c0_10, %c0_11], %21 {strides = array<i32>} : memref<2x4x16x16xf32, #tpu.memory_space<vmem>>, vector<1x4x16x16xf32>,
    %c0_12 = arith.constant 0 : index
    %c0_13 = arith.constant 0 : index
    %c0_14 = arith.constant 0 : index
    %c0_15 = arith.constant 0 : index
    %23 = vector.load %arg2[%c0_12, %c0_13, %c0_14, %c0_15] : memref<2x4x16x16xf32, #tpu.memory_space<vmem>>, vector<1x4x16x16xf32>
    %c1_16 = arith.constant 1 : index
    %c0_17 = arith.constant 0 : index
    %c0_18 = arith.constant 0 : index
    %c0_19 = arith.constant 0 : index
    %24 = vector.load %arg2[%c1_16, %c0_17, %c0_18, %c0_19] : memref<2x4x16x16xf32, #tpu.memory_space<vmem>>, vector<1x4x16x16xf32>
    %25 = vector.shape_cast %16 : vector<1x1x16x16xi1> to vector<1x1x16x16xi1>
    %26 = vector.broadcast %25 : vector<1x1x16x16xi1> to vector<1x4x16x16xi1>
    %27 = arith.select %26, %23, %24 : vector<1x4x16x16xi1>, vector<1x4x16x16xf32>
    %c1_20 = arith.constant 1 : index
    %c0_21 = arith.constant 0 : index
    %c0_22 = arith.constant 0 : index
    %c0_23 = arith.constant 0 : index
    %28 = vector.load %arg4[%c1_20, %c0_21, %c0_22, %c0_23] : memref<2x4x16x16xf32, #tpu.memory_space<vmem>>, vector<1x4x16x16xf32>
    tpu.vector_store %arg4[%c1_20, %c0_21, %c0_22, %c0_23], %27 {strides = array<i32>} : memref<2x4x16x16xf32, #tpu.memory_space<vmem>>, vector<1x4x16x16xf32>,
    return
  }
  func.func @transform_0(%arg0: i32, %arg1: memref<4xi32, #tpu.memory_space<smem>>) -> (i32, i32, i32, i32) {
    %c0_i32 = arith.constant 0 : i32
    %c0_i32_0 = arith.constant 0 : i32
    %c0_i32_1 = arith.constant 0 : i32
    %c0_i32_2 = arith.constant 0 : i32
    return %arg0, %c0_i32, %c0_i32_0, %c0_i32_1 : i32, i32, i32, i32
  }
  func.func @transform_1(%arg0: i32, %arg1: memref<4xi32, #tpu.memory_space<smem>>) -> (i32, i32, i32, i32) {
    %c2_i32 = arith.constant 2 : i32
    %0 = arith.muli %arg0, %c2_i32 : i32
    %c2_i32_0 = arith.constant 2 : i32
    %1 = arith.addi %0, %c2_i32_0 : i32
    %c1_i32 = arith.constant 1 : i32
    %2 = arith.subi %1, %c1_i32 : i32
    %c2_i32_1 = arith.constant 2 : i32
    %c0_i32 = arith.constant 0 : i32
    %3 = arith.cmpi eq, %c2_i32_1, %c0_i32 : i32
    %c1_i32_2 = arith.constant 1 : i32
    %4 = arith.select %3, %c1_i32_2, %c2_i32_1 : i32
    %5 = arith.remsi %2, %4 : i32
    %c0_i32_3 = arith.constant 0 : i32
    %6 = arith.cmpi ne, %5, %c0_i32_3 : i32
    %c0_i32_4 = arith.constant 0 : i32
    %7 = arith.cmpi slt, %5, %c0_i32_4 : i32
    %c0_i32_5 = arith.constant 0 : i32
    %8 = arith.cmpi slt, %4, %c0_i32_5 : i32
    %9 = arith.xori %7, %8 : i1
    %10 = arith.andi %9, %6 : i1
    %11 = arith.addi %5, %4 : i32
    %12 = arith.select %10, %11, %5 : i32
    %c0_i32_6 = arith.constant 0 : i32
    %c0_i32_7 = arith.constant 0 : i32
    %c0_i32_8 = arith.constant 0 : i32
    %c0_i32_9 = arith.constant 0 : i32
    return %12, %c0_i32_6, %c0_i32_7, %c0_i32_8 : i32, i32, i32, i32
  }
  func.func @transform_2(%arg0: i32, %arg1: memref<4xi32, #tpu.memory_space<smem>>) -> (i32, i32, i32, i32) {
    %c0_i32 = arith.constant 0 : i32
    %c0_i32_0 = arith.constant 0 : i32
    %c0_i32_1 = arith.constant 0 : i32
    %c0_i32_2 = arith.constant 0 : i32
    return %arg0, %c0_i32, %c0_i32_0, %c0_i32_1 : i32, i32, i32, i32
  }
}

</mosaic_0001>

<llo_original>
// kernel: tpu_custom_call.1
$region0: #{tpu_custom_call.1}
  #allocation0 [shape = 'u32[]', space=smem, size = 0x4, offset = 0x4, fixed_abs, tag = 'smem constant byte address 0x4 - core index']
  #allocation1 [shape = 'u32[144,128]{1,0:T(1,128)}', space=vmem, size = 0x12000, scoped, tag = 'internal scratch']
  #allocation2 [shape = 's32[1]{0}', space=sflag, size = 0x4, scoped, tag = 'scoped memory for tpu_custom_call.1']
  #allocation3 [shape = 'u8[512]{0}', space=smem, size = 0x200, scoped, tag = 'prefetched SMEM operand 0']
  %s0 = inlined_call_operand.hbm [shape: s32[4], index: 0, kind: input, shape index: {}]
  %s1 = inlined_call_operand.hbm [shape: f32[2,4,16,16], index: 1, kind: input, shape index: {}]
  %s2 = inlined_call_operand.hbm [shape: f32[2,4,16,16], index: 2, kind: input, shape index: {}]
  %s3 = inlined_call_operand.hbm [shape: f32[2,4,16,16], index: 3, kind: output, shape index: {}]
  %s4 = sld [smem:[#allocation0]]
  $region26: #{tpu_custom_call.1} parent=0
    _
  %s6 = ssub.s32 1, %s4
  %s7 = scalar_select 0, %s6, %s4
  %9 = dma.hbm_to_smem %s0, 16, [#allocation3], [#allocation2]
  %10 = dma.done [#allocation2], 16
  %11 = sfence
  $region1: #{tpu_custom_call.1} parent=0
    #allocation4 [shape = 'u8[65536]{0}', space=vmem, size = 0x10000, scoped, tag = 'input window, operand 1, single buffered']
    #allocation5 [shape = 's32[1]{0}', space=sflag, size = 0x4, scoped, tag = 'scoped memory for tpu_custom_call.1']
    #allocation6 [shape = 's32[1]{0}', space=sflag, size = 0x4, scoped, tag = 'scoped memory for tpu_custom_call.1']
    #allocation7 [shape = 'u8[32768]{0}', space=vmem, size = 0x8000, scoped, tag = 'input window, operand 2, single buffered']
    #allocation8 [shape = 's32[1]{0}', space=sflag, size = 0x4, scoped, tag = 'scoped memory for tpu_custom_call.1']
    #allocation9 [shape = 'u8[65536]{0}', space=vmem, size = 0x10000, scoped, tag = 'output window, operand 0, single buffered']
    %12 = vsyncpa [#allocation5], 0
    %13 = vsyncpa [#allocation8], 0
    %14 = vsyncpa [#allocation6], 0
    // Predicated region
    $region2: #{tpu_custom_call.1} parent=1 // pred_check
      _
    $region3: #{tpu_custom_call.1} parent=1 // pred_check_branch
      %16 = sbr.rel (0) target = $region5
    $region4: #{tpu_custom_call.1} parent=1 // pred_region
      %s18 = ssub.s32 2048, 2048
      %19 = vsyncadd [#allocation5], %s18
      %s20 = sshll.u32 [#allocation4], 4
      %s21 = int_to_ptr.vmem [resolvable:$true] %s20
      %26 = dma.hbm_to_vmem [thread:$0]  %s1, 2048, %s21, [#allocation5], 128, 128, 8
    $region5: #{tpu_custom_call.1} parent=1 // pred_fallthru
      _
    // Predicated region
    $region6: #{tpu_custom_call.1} parent=1 // pred_check
      _
    $region7: #{tpu_custom_call.1} parent=1 // pred_check_branch
      %28 = sbr.rel (0) target = $region9
    $region8: #{tpu_custom_call.1} parent=1 // pred_region
      %s29 = smul.u32 0, 2
      %s30 = sadd.s32 %s29, 1
      %p31 = scmp.lt.s32.totalorder %s30, 0
      %s32 = ssub.s32 0, %s30
      %s33 = scalar_select %p31, %s32, %s30
      %s34 = sand.u32 %s33, 1
      %s35 = ssub.s32 0, %s34
      %s36 = scalar_select %p31, %s35, %s34
      %p37 = scmp.ne.s32.totalorder %s36, 0
      %p38 = scmp.lt.s32.totalorder %s36, 0
      %p39 = pnand %p38, %p37
      %p40 = pneg %p39
      %s41 = sadd.s32 %s36, 2
      %s42 = scalar_select %p40, %s41, %s36
      %s44 = ssub.s32 1024, 1024
      %45 = vsyncadd [#allocation8], %s44
      %s46 = smul.addr %s42, 8
      %s47 = smul.addr %s46, 128
      %s48 = scalar_lea.hbm %s2, %s47
      %s49 = sshll.u32 [#allocation7], 4
      %s50 = int_to_ptr.vmem [resolvable:$true] %s49
      %55 = dma.hbm_to_vmem [thread:$0]  %s48, 1024, %s50, [#allocation8], 128, 128, 8
    $region9: #{tpu_custom_call.1} parent=1 // pred_fallthru
      _
    // Predicated region
    $region10: #{tpu_custom_call.1} parent=1 // pred_check
      _
    $region11: #{tpu_custom_call.1} parent=1 // pred_check_branch
      %57 = sbr.rel (0) target = $region13
    $region12: #{tpu_custom_call.1} parent=1 // pred_region
      %58 = dma.done [#allocation5], 2048
    $region13: #{tpu_custom_call.1} parent=1 // pred_fallthru
      _
    // Predicated region
    $region14: #{tpu_custom_call.1} parent=1 // pred_check
      _
    $region15: #{tpu_custom_call.1} parent=1 // pred_check_branch
      %60 = sbr.rel (0) target = $region17
    $region16: #{tpu_custom_call.1} parent=1 // pred_region
      %61 = dma.done [#allocation8], 1024
    $region17: #{tpu_custom_call.1} parent=1 // pred_fallthru
      _
    %s62 = smul.u32 0, 2
    %s63 = sadd.s32 %s62, 1
    %p64 = scmp.lt.s32.totalorder %s63, 0
    %s65 = ssub.s32 0, %s63
    %s66 = scalar_select %p64, %s65, %s63
    %s67 = sand.u32 %s66, 1
    %s68 = ssub.s32 0, %s67
    %s69 = scalar_select %p64, %s68, %s67
    %p70 = scmp.ne.s32.totalorder %s69, 0
    %p71 = scmp.lt.s32.totalorder %s69, 0
    %p72 = pnand %p71, %p70
    %p73 = pneg %p72
    %s74 = sadd.s32 %s69, 2
    %s75 = scalar_select %p73, %s74, %s69
    %s76 = sld [smem:[#allocation3]]
    %s77 = sld [smem:[#allocation3 + $0x1]]
    %s78 = sld [smem:[#allocation3 + $0x2]]
    %s79 = sld [smem:[#allocation3 + $0x3]]
    %v80 = vlaneseq
    %v81 = vshrl.u32 %v80, 7
    %v82 = vadd.s32 %v81, 8
    %v83 = vlaneseq
    %v84 = vand.u32 %v83, 127
    %v85 = vstv %s76
    %vm86 = vcmp.ge.s32.totalorder %v81, %v85
    %vm87 = vcmp.ge.s32.totalorder %v82, %v85
    %v88 = vstv %s77
    %vm89 = vcmp.lt.s32.totalorder %v81, %v88
    %vm90 = vcmp.lt.s32.totalorder %v82, %v88
    %vm91 = vmand %vm86, %vm89
    %vm92 = vmand %vm87, %vm90
    %v93 = vstv %s78
    %vm94 = vcmp.ge.s32.totalorder %v84, %v93
    %vm95 = vmand %vm91, %vm94
    %vm96 = vmand %vm92, %vm94
    %v97 = vstv %s79
    %vm98 = vcmp.lt.s32.totalorder %v84, %v97
    %vm99 = vmand %vm95, %vm98
    %vm100 = vmand %vm96, %vm98
    %v101 = vld [vmem:[#allocation7] sm:$0xff]
    %v102 = vld [vmem:[#allocation7 + $0x8] sm:$0xff]
    %v103 = vld [vmem:[#allocation7 + $0x10] sm:$0xff]
    %v104 = vld [vmem:[#allocation7 + $0x18] sm:$0xff]
    %v105 = vld [vmem:[#allocation7 + $0x20] sm:$0xff]
    %v106 = vld [vmem:[#allocation7 + $0x28] sm:$0xff]
    %v107 = vld [vmem:[#allocation7 + $0x30] sm:$0xff]
    %v108 = vld [vmem:[#allocation7 + $0x38] sm:$0xff]
    %v109 = vld [vmem:[#allocation4] sm:$0xff]
    %v110 = vld [vmem:[#allocation4 + $0x8] sm:$0xff]
    %v111 = vld [vmem:[#allocation4 + $0x10] sm:$0xff]
    %v112 = vld [vmem:[#allocation4 + $0x18] sm:$0xff]
    %v113 = vld [vmem:[#allocation4 + $0x20] sm:$0xff]
    %v114 = vld [vmem:[#allocation4 + $0x28] sm:$0xff]
    %v115 = vld [vmem:[#allocation4 + $0x30] sm:$0xff]
    %v116 = vld [vmem:[#allocation4 + $0x38] sm:$0xff]
    %v117 = vsel %vm99, 1, 0
    %v118 = vsel %vm100, 1, 0
    %vm119 = vcmp.eq.s32.totalorder %v117, 1
    %vm120 = vcmp.eq.s32.totalorder %v118, 1
    %v121 = vsel %vm119, %v101, %v109
    %v122 = vsel %vm120, %v102, %v110
    %v123 = vsel %vm119, %v103, %v111
    %v124 = vsel %vm120, %v104, %v112
    %v125 = vsel %vm119, %v105, %v113
    %v126 = vsel %vm120, %v106, %v114
    %v127 = vsel %vm119, %v107, %v115
    %v128 = vsel %vm120, %v108, %v116
    %vm129 = vcmask 130048
    %130 = vst.msk [vmem:[#allocation9] sm:$0xff] %vm129, %v121
    %131 = vst.msk [vmem:[#allocation9 + $0x8] sm:$0xff] %vm129, %v122
    %132 = vst.msk [vmem:[#allocation9 + $0x10] sm:$0xff] %vm129, %v123
    %133 = vst.msk [vmem:[#allocation9 + $0x18] sm:$0xff] %vm129, %v124
    %134 = vst.msk [vmem:[#allocation9 + $0x20] sm:$0xff] %vm129, %v125
    %135 = vst.msk [vmem:[#allocation9 + $0x28] sm:$0xff] %vm129, %v126
    %136 = vst.msk [vmem:[#allocation9 + $0x30] sm:$0xff] %vm129, %v127
    %137 = vst.msk [vmem:[#allocation9 + $0x38] sm:$0xff] %vm129, %v128
    %v138 = vld [vmem:[#allocation4] sm:$0xff]
    %v139 = vld [vmem:[#allocation4 + $0x8] sm:$0xff]
    %v140 = vld [vmem:[#allocation4 + $0x10] sm:$0xff]
    %v141 = vld [vmem:[#allocation4 + $0x18] sm:$0xff]
    %v142 = vld [vmem:[#allocation4 + $0x20] sm:$0xff]
    %v143 = vld [vmem:[#allocation4 + $0x28] sm:$0xff]
    %v144 = vld [vmem:[#allocation4 + $0x30] sm:$0xff]
    %v145 = vld [vmem:[#allocation4 + $0x38] sm:$0xff]
    %s146 = scalar_lea.vmem [#allocation4], 64
    %v147 = vld [vmem:[%s146] sm:$0xff]
    %v148 = vld [vmem:[%s146 + $0x8] sm:$0xff]
    %v149 = vld [vmem:[%s146 + $0x10] sm:$0xff]
    %v150 = vld [vmem:[%s146 + $0x18] sm:$0xff]
    %v151 = vld [vmem:[%s146 + $0x20] sm:$0xff]
    %v152 = vld [vmem:[%s146 + $0x28] sm:$0xff]
    %v153 = vld [vmem:[%s146 + $0x30] sm:$0xff]
    %v154 = vld [vmem:[%s146 + $0x38] sm:$0xff]
    %v155 = vsel %vm119, %v138, %v147
    %v156 = vsel %vm120, %v139, %v148
    %v157 = vsel %vm119, %v140, %v149
    %v158 = vsel %vm120, %v141, %v150
    %v159 = vsel %vm119, %v142, %v151
    %v160 = vsel %vm120, %v143, %v152
    %v161 = vsel %vm119, %v144, %v153
    %v162 = vsel %vm120, %v145, %v154
    %s163 = scalar_lea.vmem [#allocation9], 64
    %164 = vst.msk [vmem:[%s163] sm:$0xff] %vm129, %v155
    %165 = vst.msk [vmem:[%s163 + $0x8] sm:$0xff] %vm129, %v156
    %166 = vst.msk [vmem:[%s163 + $0x10] sm:$0xff] %vm129, %v157
    %167 = vst.msk [vmem:[%s163 + $0x18] sm:$0xff] %vm129, %v158
    %168 = vst.msk [vmem:[%s163 + $0x20] sm:$0xff] %vm129, %v159
    %169 = vst.msk [vmem:[%s163 + $0x28] sm:$0xff] %vm129, %v160
    %170 = vst.msk [vmem:[%s163 + $0x30] sm:$0xff] %vm129, %v161
    %171 = vst.msk [vmem:[%s163 + $0x38] sm:$0xff] %vm129, %v162
    // Predicated region
    $region18: #{tpu_custom_call.1} parent=1 // pred_check
      _
    $region19: #{tpu_custom_call.1} parent=1 // pred_check_branch
      %173 = sbr.rel (0) target = $region21
    $region20: #{tpu_custom_call.1} parent=1 // pred_region
      %s175 = ssub.s32 2048, 2048
      %176 = vsyncadd [#allocation6], %s175
      %s177 = sshll.u32 [#allocation9], 4
      %s178 = int_to_ptr.vmem [resolvable:$true] %s177
      %183 = dma.vmem_to_hbm [thread:$0]  %s178, 2048, %s3, [#allocation6], 128, 128, 8
    $region21: #{tpu_custom_call.1} parent=1 // pred_fallthru
      _
    // Predicated region
    $region22: #{tpu_custom_call.1} parent=1 // pred_check
      _
    $region23: #{tpu_custom_call.1} parent=1 // pred_check_branch
      %185 = sbr.rel (0) target = $region25
    $region24: #{tpu_custom_call.1} parent=1 // pred_region
      %186 = dma.done [#allocation6], 2048
    $region25: #{tpu_custom_call.1} parent=1 // pred_fallthru
      _
    %187 = vsyncpa [#allocation5], 1
    %188 = vsyncpa [#allocation8], 1
    %189 = vsyncpa [#allocation6], 1

</llo_original>
